<compile_context>
chip_gen: v5e
topology: v5e:2x2
jax: 0.10.0
libtpu: 0.0.40
codegen_flags: <defaults>
</compile_context>

<pallas_src>
import math

import jax
import jax.numpy as jnp
import numpy as np
from jax import lax
from jax.experimental import pallas as pl
from jax.experimental.pallas import tpu as pltpu


def _vmem_limit_bytes():
    # Generation-aware scoped-VMEM budget: ~1/2 of physical VMEM, capped at
    # 64 MiB (v5e/v6e: 128 MiB physical -> 64 MiB; v7x: 64 MiB/TC -> 32 MiB).
    default = 64 * 1024 * 1024
    try:
        cap = int(getattr(pltpu.get_tpu_info(), "vmem_capacity_bytes", default))
    except Exception:
        cap = default
    return min(cap // 2, 64 * 1024 * 1024)


_VMEM_LIMIT = _vmem_limit_bytes()


def _choose_tile(m, cap):
    """Largest multiple-of-8 divisor of m that is <= cap; when m allows it,
    keep at least 2 blocks so both v7x TensorCores get work."""
    if m <= 8:
        return m
    cap_eff = min(cap, m)
    if m >= 16:
        cap_eff = min(cap_eff, m // 2)   # >= 2 blocks on the parallel axis
    t = (cap_eff // 8) * 8
    while t >= 8:
        if m % t == 0:
            return t
        t -= 8
    # TODO(synk): awkward m (no multiple-of-8 divisor <= cap) falls back to one
    #             full-size block; a pad-and-mask path would be better.
    return m


# ----------------------------------------------------------------- kernels

def _sqdist_kernel(xr_ref, xt_ref, aa_ref, o_ref):
    # xr_ref: (1, tr, 3) row tile of xyz
    # xt_ref: (1, 3, N)  transposed xyz (lane-dense in N, streams into the MXU)
    # aa_ref: (1, 1, N)  precomputed per-point squared norms
    # o_ref : (1, tr, N) ranking matrix (||x_i||^2 row constant dropped)
    cross = jnp.dot(xr_ref[0], xt_ref[0],
                    preferred_element_type=jnp.float32)        # (tr, N)
    o_ref[0] = aa_ref[0] - 2.0 * cross


def _fc1_qkv_kernel(f_ref, w1_ref, b1_ref, wqkv_ref, o_ref):
    # fc1 activation x stays resident in VMEM; single (tm, 3D) QKV matmul.
    x = (jnp.dot(f_ref[...], w1_ref[...],
                 preferred_element_type=jnp.float32) + b1_ref[...])
    o_ref[...] = jnp.dot(x, wqkv_ref[...],
                         preferred_element_type=jnp.float32).astype(o_ref.dtype)


def _pt_attn_kernel(q_ref, pq_ref, kf_ref, vf_ref, pg_ref, pre_ref,
                    bd1_ref, wd2_ref, bd2_ref,
                    wg1_ref, bg1_ref, wg2_ref, bg2_ref,
                    w2_ref, b2_ref,
                    attn_ref, out_ref):
    TM, K, D = kf_ref.shape
    inv_sqrt_d = 1.0 / math.sqrt(D)

    # fc_delta, layer-1 linearity folded out:
    #   relu((xyz_i - xyz_j) @ d1_w + d1_b) == relu(pq_i - pg_j + d1_b)
    h = jnp.maximum(pq_ref[...][:, None, :] - pg_ref[...] + bd1_ref[...], 0.0)
    pos = (jnp.dot(h.reshape(TM * K, D), wd2_ref[...],
                   preferred_element_type=jnp.float32) + bd2_ref[...])
    pos3 = pos.reshape(TM, K, D)                                # pos_enc

    # fc_gamma MLP on (q - k + pos_enc): Linear(D, D) -> ReLU -> Linear(D, D)
    gin = q_ref[...][:, None, :] - kf_ref[...] + pos3           # (TM, K, D)
    g = jnp.maximum(
        jnp.dot(gin.reshape(TM * K, D), wg1_ref[...],
                preferred_element_type=jnp.float32) + bg1_ref[...], 0.0)
    a = ((jnp.dot(g, wg2_ref[...], preferred_element_type=jnp.float32)
          + bg2_ref[...]) * inv_sqrt_d).reshape(TM, K, D)

    # softmax over the K (neighbour) axis  (dim=-2 in the PyTorch code)
    m = jnp.max(a, axis=1, keepdims=True)
    e = jnp.exp(a - m)
    s = jnp.sum(e, axis=1, keepdims=True)
    # TODO(synk): pl.reciprocal(..., approx=True) routes this to the EUP slot;
    #             exact form kept to hold the tight 2e-4 test tolerance.
    attn = e * pl.reciprocal(s, approx=False)

    # lane-dense (TM, K*D) store for the attention-weights output
    attn_ref[...] = attn.reshape(TM, K * D).astype(attn_ref.dtype)

    # res = einsum('bmnf,bmnf->bmf', attn, v + pos_enc); fused fc2 + residual
    res = jnp.sum(attn * (vf_ref[...] + pos3), axis=1)          # (TM, D)
    out_ref[...] = (jnp.dot(res, w2_ref[...],
                            preferred_element_type=jnp.float32)
                    + b2_ref[...] + pre_ref[...]).astype(out_ref.dtype)


# ----------------------------------------------------------------- wrappers

def pallas_square_distance(xyz, *, cap=256):
    B, N, C = xyz.shape
    # size the row tile so double-buffered (tr, N) f32 output blocks stay well
    # inside the scoped-VMEM budget (matters for large N on v7x's 64 MiB).
    max_rows = max(8, (_VMEM_LIMIT // 4) // (N * 4 * 2))
    tr = _choose_tile(N, min(cap, max_rows))
    xyz_t = jnp.swapaxes(xyz, 1, 2)                        # (B, 3, N)
    sq = jnp.sum(xyz * xyz, axis=-1)[:, None, :]           # (B, 1, N)
    return pl.pallas_call(
        _sqdist_kernel,
        out_shape=jax.ShapeDtypeStruct((B, N, N), jnp.float32),
        grid=(B, N // tr),
        in_specs=[pl.BlockSpec((1, tr, C), lambda b, i: (b, i, 0)),
                  pl.BlockSpec((1, C, N), lambda b, i: (b, 0, 0)),
                  pl.BlockSpec((1, 1, N), lambda b, i: (b, 0, 0))],
        out_specs=pl.BlockSpec((1, tr, N), lambda b, i: (b, i, 0)),
        compiler_params=pltpu.CompilerParams(
            dimension_semantics=("parallel", "parallel"),
            vmem_limit_bytes=_VMEM_LIMIT),
    )(xyz, xyz_t, sq)


def pallas_fc1_qkv(feat, w1, b1, wqkv, *, cap=256):
    M, Dp = feat.shape
    D = w1.shape[1]
    tm = _choose_tile(M, cap)
    return pl.pallas_call(
        _fc1_qkv_kernel,
        out_shape=jax.ShapeDtypeStruct((M, 3 * D), jnp.float32),
        grid=(M // tm,),
        in_specs=[pl.BlockSpec((tm, Dp), lambda i: (i, 0)),
                  pl.BlockSpec((Dp, D), lambda i: (0, 0)),
                  pl.BlockSpec((1, D), lambda i: (0, 0)),
                  pl.BlockSpec((D, 3 * D), lambda i: (0, 0))],
        out_specs=pl.BlockSpec((tm, 3 * D), lambda i: (i, 0)),
        compiler_params=pltpu.CompilerParams(
            dimension_semantics=("parallel",),
            vmem_limit_bytes=_VMEM_LIMIT),
    )(feat, w1, b1.reshape(1, D), wqkv)


def pallas_point_attention(q, pq, kf, vf, pg, pre, params, *, cap=128):
    # cap=128 keeps the ~6 live (tm, K, D) f32 intermediates from spilling.
    M, K, D = kf.shape
    dp = pre.shape[-1]
    tm = _choose_tile(M, cap)

    def wmap(i):
        return (0, 0)

    in_specs = [
        pl.BlockSpec((tm, D), lambda i: (i, 0)),          # q
        pl.BlockSpec((tm, D), lambda i: (i, 0)),          # proj_q = xyz @ d1_w
        pl.BlockSpec((tm, K, D), lambda i: (i, 0, 0)),    # gathered k
        pl.BlockSpec((tm, K, D), lambda i: (i, 0, 0)),    # gathered v
        pl.BlockSpec((tm, K, D), lambda i: (i, 0, 0)),    # gathered delta-proj
        pl.BlockSpec((tm, dp), lambda i: (i, 0)),         # residual input
        pl.BlockSpec((1, D), wmap),                       # fc_delta[0] bias
        pl.BlockSpec((D, D), wmap), pl.BlockSpec((1, D), wmap),   # fc_delta[2]
        pl.BlockSpec((D, D), wmap), pl.BlockSpec((1, D), wmap),   # fc_gamma[0]
        pl.BlockSpec((D, D), wmap), pl.BlockSpec((1, D), wmap),   # fc_gamma[2]
        pl.BlockSpec((D, dp), wmap), pl.BlockSpec((1, dp), wmap), # fc2
    ]
    out_specs = (pl.BlockSpec((tm, K * D), lambda i: (i, 0)),     # attn slab
                 pl.BlockSpec((tm, dp), lambda i: (i, 0)))        # fc2 + res

    attn2d, out = pl.pallas_call(
        _pt_attn_kernel,
        out_shape=(jax.ShapeDtypeStruct((M, K * D), jnp.float32),
                   jax.ShapeDtypeStruct((M, dp), jnp.float32)),
        grid=(M // tm,),
        in_specs=in_specs,
        out_specs=out_specs,
        compiler_params=pltpu.CompilerParams(
            dimension_semantics=("parallel",),
            vmem_limit_bytes=_VMEM_LIMIT),
    )(q, pq, kf, vf, pg, pre,
      params['d1_b'].reshape(1, D),
      params['d2_w'], params['d2_b'].reshape(1, D),
      params['g1_w'], params['g1_b'].reshape(1, D),
      params['g2_w'], params['g2_b'].reshape(1, D),
      params['fc2_w'], params['fc2_b'].reshape(1, dp))
    return attn2d.reshape(M, K, D), out


# ----------------------------------------------------------------- glue

def index_points(points, idx):
    # points [B, N, C], idx [B, S, K] -> [B, S, K, C]
    B, S, K = idx.shape
    flat = idx.reshape(B, S * K)
    out = jnp.take_along_axis(points, flat[..., None], axis=1)
    return out.reshape(B, S, K, points.shape[-1])


def transformer_block_forward(params, xyz, features, k_nn):
    B, N, _ = xyz.shape
    d_points = features.shape[-1]
    d_model = params['fc1_w'].shape[1]
    M = B * N

    # kNN selection: MXU ranking matrix in Pallas, top_k in JAX.
    dists = pallas_square_distance(xyz)
    # TODO(synk): top_k / sorting has no clean Pallas equivalent; done in JAX.
    knn_idx = lax.top_k(-dists, k_nn)[1]                         # (B, N, K)

    feat2 = features.reshape(M, d_points)

    # fused fc1 -> QKV (single kernel, single lane-dense (M, 3D) output)
    wqkv = jnp.concatenate(
        [params['wq_w'], params['wk_w'], params['wv_w']], axis=1)   # (D, 3D)
    qkv = pallas_fc1_qkv(feat2, params['fc1_w'], params['fc1_b'], wqkv)
    q = qkv[:, :d_model]                                            # (M, D)
    kv = qkv[:, d_model:].reshape(B, N, 2 * d_model)                # [k | v]

    # fc_delta layer-1 linearity: project xyz once, gather per neighbour.
    dproj = (xyz.reshape(M, 3) @ params['d1_w']).reshape(B, N, d_model)

    # single combined gather of [k | v | delta-proj]
    # TODO(synk): fuse this gather into the attention kernel (scalar-prefetched
    #             knn_idx + manual DMA) so the (M, K, 3D) slab never hits HBM.
    src = jnp.concatenate([kv, dproj], axis=-1)                     # (B, N, 3D)
    gathered = index_points(src, knn_idx).reshape(M, k_nn, 3 * d_model)
    kf = gathered[:, :, :d_model]
    vf = gathered[:, :, d_model:2 * d_model]
    pg = gathered[:, :, 2 * d_model:]

    # attention + fc2 + residual fused into a single kernel
    attn, out = pallas_point_attention(
        q, dproj.reshape(M, d_model), kf, vf, pg,
        features.reshape(M, d_points), params)
    return out.reshape(B, N, d_points), attn.reshape(B, N, k_nn, d_model)


# ----------------------------------------------------------------- reference

def reference_forward(params, xyz, features, k_nn):
    d_model = params['fc1_w'].shape[1]
    dists = jnp.sum((xyz[:, :, None, :] - xyz[:, None, :, :]) ** 2, axis=-1)
    knn_idx = jnp.argsort(dists, axis=-1)[:, :, :k_nn]
    knn_xyz = index_points(xyz, knn_idx)
    pre = features
    x = features @ params['fc1_w'] + params['fc1_b']
    q = x @ params['wq_w']
    kf = index_points(x @ params['wk_w'], knn_idx)
    vf = index_points(x @ params['wv_w'], knn_idx)
    rel = xyz[:, :, None, :] - knn_xyz
    pos = (jnp.maximum(rel @ params['d1_w'] + params['d1_b'], 0.0)
           @ params['d2_w'] + params['d2_b'])
    gin = q[:, :, None, :] - kf + pos
    a = (jnp.maximum(gin @ params['g1_w'] + params['g1_b'], 0.0)
         @ params['g2_w'] + params['g2_b'])
    a = jax.nn.softmax(a / math.sqrt(d_model), axis=-2)
    res = jnp.sum(a * (vf + pos), axis=2)
    res = res @ params['fc2_w'] + params['fc2_b'] + pre
    return res, a


# ----------------------------------------------------------------- params

def init_linear(key, fan_in, fan_out, bias=True):
    kw, kb = jax.random.split(key)
    bound = 1.0 / math.sqrt(fan_in)
    w = jax.random.uniform(kw, (fan_in, fan_out), jnp.float32, -bound, bound)
    b = (jax.random.uniform(kb, (fan_out,), jnp.float32, -bound, bound)
         if bias else None)
    return w, b


def init_params(key, d_points, d_model):
    keys = jax.random.split(key, 8)
    p = {}
    p['fc1_w'], p['fc1_b'] = init_linear(keys[0], d_points, d_model)
    p['fc2_w'], p['fc2_b'] = init_linear(keys[1], d_model, d_points)
    p['d1_w'], p['d1_b'] = init_linear(keys[2], 3, d_model)
    p['d2_w'], p['d2_b'] = init_linear(keys[3], d_model, d_model)
    p['g1_w'], p['g1_b'] = init_linear(keys[4], d_model, d_model)
    p['g2_w'], p['g2_b'] = init_linear(keys[5], d_model, d_model)
    p['wq_w'], _ = init_linear(keys[6], d_model, d_model, bias=False)
    p['wk_w'], _ = init_linear(keys[7], d_model, d_model, bias=False)
    kv = jax.random.fold_in(key, 123)
    p['wv_w'], _ = init_linear(kv, d_model, d_model, bias=False)
    return p


# ----------------------------------------------------------------- main

if __name__ == "__main__":
    B, N, d_points, d_model, k_nn = 2, 16, 8, 32, 8

    key = jax.random.PRNGKey(0)
    k_xyz, k_feat, k_par = jax.random.split(key, 3)
    xyz = jax.random.normal(k_xyz, (B, N, 3), jnp.float32)
    features = jax.random.normal(k_feat, (B, N, d_points), jnp.float32)
    params = init_params(k_par, d_points, d_model)

    out, attn = transformer_block_forward(params, xyz, features, k_nn)
    out, attn = jax.block_until_ready((out, attn))

    ref_out, ref_attn = reference_forward(params, xyz, features, k_nn)
    np.testing.assert_allclose(np.asarray(out), np.asarray(ref_out),
                               rtol=2e-4, atol=2e-4)
    np.testing.assert_allclose(np.asarray(attn), np.asarray(ref_attn),
                               rtol=2e-4, atol=2e-4)

    print("KERNEL_OK")
</pallas_src>

<mosaic_0001>
module attributes {stable_mosaic.version = 11 : i64} {
  func.func @_sqdist_kernel(%arg0: i32, %arg1: i32, %arg2: memref<1x8x3xf32, #tpu.memory_space<vmem>>, %arg3: memref<1x3x16xf32, #tpu.memory_space<vmem>>, %arg4: memref<1x1x16xf32, #tpu.memory_space<vmem>>, %arg5: memref<1x8x16xf32, #tpu.memory_space<vmem>>) attributes {dimension_semantics = [#tpu.dimension_semantics<parallel>, #tpu.dimension_semantics<parallel>], iteration_bounds = array<i64: 2, 2>, scalar_prefetch = 0 : i64, scratch_operands = 0 : i64, tpu.core_type = #tpu.core_type<tc>, window_params = [{transform_indices = @transform_0, window_bounds = array<i64: 1, 8, 3>}, {transform_indices = @transform_1, window_bounds = array<i64: 1, 3, 16>}, {transform_indices = @transform_2, window_bounds = array<i64: 1, 1, 16>}, {transform_indices = @transform_3, window_bounds = array<i64: 1, 8, 16>}]} {
    %c0 = arith.constant 0 : index
    %c0_0 = arith.constant 0 : index
    %c0_1 = arith.constant 0 : index
    %0 = vector.load %arg2[%c0, %c0_0, %c0_1] : memref<1x8x3xf32, #tpu.memory_space<vmem>>, vector<1x8x3xf32>
    %1 = vector.shape_cast %0 : vector<1x8x3xf32> to vector<8x3xf32>
    %c0_2 = arith.constant 0 : index
    %c0_3 = arith.constant 0 : index
    %c0_4 = arith.constant 0 : index
    %2 = vector.load %arg3[%c0_2, %c0_3, %c0_4] : memref<1x3x16xf32, #tpu.memory_space<vmem>>, vector<1x3x16xf32>
    %3 = vector.shape_cast %2 : vector<1x3x16xf32> to vector<3x16xf32>
    %cst = arith.constant dense<0.000000e+00> : vector<8x16xf32>
    %4 = tpu.matmul %1, %3, %cst {dimension_numbers = #tpu.dot_dimension_numbers<[1], [0], [0], [1], [0, 0, 1, 1], [], []>} : vector<8x3xf32>, vector<3x16xf32>, vector<8x16xf32> -> vector<8x16xf32>
    %c0_5 = arith.constant 0 : index
    %c0_6 = arith.constant 0 : index
    %c0_7 = arith.constant 0 : index
    %5 = vector.load %arg4[%c0_5, %c0_6, %c0_7] : memref<1x1x16xf32, #tpu.memory_space<vmem>>, vector<1x1x16xf32>
    %6 = vector.shape_cast %5 : vector<1x1x16xf32> to vector<1x16xf32>
    %cst_8 = arith.constant 2.000000e+00 : f32
    %7 = vector.broadcast %cst_8 : f32 to vector<8x16xf32>
    %8 = arith.mulf %7, %4 : vector<8x16xf32>
    %9 = vector.broadcast %6 : vector<1x16xf32> to vector<8x16xf32>
    %10 = arith.subf %9, %8 : vector<8x16xf32>
    %c0_9 = arith.constant 0 : index
    %c0_10 = arith.constant 0 : index
    %c0_11 = arith.constant 0 : index
    %11 = vector.load %arg5[%c0_9, %c0_10, %c0_11] : memref<1x8x16xf32, #tpu.memory_space<vmem>>, vector<1x8x16xf32>
    %12 = vector.shape_cast %11 : vector<1x8x16xf32> to vector<8x16xf32>
    %13 = vector.shape_cast %10 : vector<8x16xf32> to vector<1x8x16xf32>
    tpu.vector_store %arg5[%c0_9, %c0_10, %c0_11], %13 {strides = array<i32>} : memref<1x8x16xf32, #tpu.memory_space<vmem>>, vector<1x8x16xf32>,
    return
  }
  func.func @transform_0(%arg0: i32, %arg1: i32) -> (i32, i32, i32) {
    %c0_i32 = arith.constant 0 : i32
    %c0_i32_0 = arith.constant 0 : i32
    return %arg0, %arg1, %c0_i32 : i32, i32, i32
  }
  func.func @transform_1(%arg0: i32, %arg1: i32) -> (i32, i32, i32) {
    %c0_i32 = arith.constant 0 : i32
    %c0_i32_0 = arith.constant 0 : i32
    %c0_i32_1 = arith.constant 0 : i32
    return %arg0, %c0_i32, %c0_i32_0 : i32, i32, i32
  }
  func.func @transform_2(%arg0: i32, %arg1: i32) -> (i32, i32, i32) {
    %c0_i32 = arith.constant 0 : i32
    %c0_i32_0 = arith.constant 0 : i32
    %c0_i32_1 = arith.constant 0 : i32
    return %arg0, %c0_i32, %c0_i32_0 : i32, i32, i32
  }
  func.func @transform_3(%arg0: i32, %arg1: i32) -> (i32, i32, i32) {
    %c0_i32 = arith.constant 0 : i32
    %c0_i32_0 = arith.constant 0 : i32
    return %arg0, %arg1, %c0_i32 : i32, i32, i32
  }
}

</mosaic_0001>

<llo_original>
// kernel: tpu_custom_call.1
$region0: #{tpu_custom_call.1}
  #allocation0 [shape = 'u32[]', space=smem, size = 0x4, offset = 0x4, fixed_abs, tag = 'smem constant byte address 0x4 - core index']
  #allocation1 [shape = 'u32[72,128]{1,0:T(1,128)}', space=vmem, size = 0x9000, scoped, tag = 'internal scratch']
  %s0 = inlined_call_operand.vmem [shape: f32[2,16,3], index: 0, kind: input, shape index: {}]
  %s1 = inlined_call_operand.vmem [shape: f32[2,3,16], index: 1, kind: input, shape index: {}]
  %s2 = inlined_call_operand.vmem [shape: f32[2,1,16], index: 2, kind: input, shape index: {}]
  %s3 = inlined_call_operand.hbm [shape: f32[2,16,16], index: 3, kind: output, shape index: {}]
  %s4 = sld [smem:[#allocation0]]
  $region45: #{tpu_custom_call.1} parent=0
    _
  %s6 = ssub.s32 1, %s4
  %s7 = scalar_select 0, %s6, %s4
  $region1: #{tpu_custom_call.1} parent=0
    #allocation2 [shape = 'u8[8192]{0}', space=vmem, size = 0x2000, scoped, tag = 'output window, operand 0']
    #allocation3 [shape = 's32[2]{0}', space=sflag, size = 0x8, scoped, tag = 'scoped memory for tpu_custom_call.1']
    %8 = vsyncpa [#allocation3], 0
    %s9 = scalar_lea.sflag [#allocation3], 1
    %10 = vsyncpa %s9, 0
    loop: start=0, step=1, limit=6
    $region2: #{tpu_custom_call.1} parent=1 // loop_pre_header
      _
    $region3: #{tpu_custom_call.1} parent=1 // loop_header
      %s12 = sphi 0, %s16
      %p13 = scmp.ge.s32.totalorder %s12, 6
      %s19 = sphi 0, %s31
      %s20 = sphi 0, %s27
      %s21 = sphi 0, %s19
      %s22 = sphi 0, %s20
      %s23 = sphi 0, %s21
      %s24 = sphi 0, %s22
      %s36 = sphi 0, %s38
      %s39 = sphi 0, %s36
      %s40 = sphi 0, %s39
      %s56 = sphi 0, %s40
      %s62 = sphi 0, %s64
      %s65 = sphi 0, %s62
      %s66 = sphi 0, %s65
      %s82 = sphi 0, %s66
      %s88 = sphi 0, %s90
      %s91 = sphi 0, %s88
      %s92 = sphi 0, %s91
      %s108 = sphi 0, %s92
      %s116 = sphi 0, %s118
      %s119 = sphi 0, %s116
      %s120 = sphi 0, %s119
      %s136 = sphi 0, %s120
    $region4: #{tpu_custom_call.1} parent=1 // loop_header_branch
      %15 = sbr.rel (%p13) target = $region8
    $region5: #{tpu_custom_call.1} parent=1 // loop_body
      %s17 = ssub.s32 %s12, 1
      %s18 = ssub.s32 %s12, 2
      %s25 = sadd.s32 1, %s20
      %p26 = scmp.ge.s32.totalorder %s25, 2
      %s27 = scalar_select %p26, 0, %s25
      %s28 = sadd.s32 1, %s19
      %s29 = scalar_select %p26, %s28, %s19
      %p30 = scmp.ge.s32.totalorder %s29, 2
      %s31 = scalar_select %p30, 0, %s29
      %s32 = ssub.s32 %s19, %s31
      %s33 = ssub.s32 %s20, %s27
      %s34 = sor.u32 %s32, %s33
      %p35 = scmp.eq.s32.totalorder %s34, 0
      %s37 = sadd.s32 %s36, 1
      %s38 = scalar_select %p35, %s36, %s37
      %p41 = pneg %p35
      %p42 = scmp.eq.s32.totalorder %s12, 3
      %p43 = por %p41, %p42
      %p44 = scmp.ne.s32.totalorder %s36, %s39
      %p45 = scmp.eq.s32.totalorder %s12, 0
      %p46 = por %p44, %p45
      %p47 = scmp.ne.s32.totalorder %s36, %s39
      %p48 = scmp.eq.s32.totalorder %s17, 3
      %p49 = por %p47, %p48
      %p50 = scmp.ne.s32.totalorder %s39, %s40
      %p51 = scmp.eq.s32.totalorder %s17, 0
      %p52 = por %p50, %p51
      %p53 = scmp.ne.s32.totalorder %s39, %s40
      %p54 = scmp.eq.s32.totalorder %s18, 3
      %p55 = por %p53, %p54
      %p57 = scmp.ne.s32.totalorder %s40, %s56
      %p58 = scmp.eq.s32.totalorder %s18, 0
      %p59 = por %p57, %p58
      %s60 = ssub.s32 %s19, %s31
      %p61 = scmp.eq.s32.totalorder %s60, 0
      %s63 = sadd.s32 %s62, 1
      %s64 = scalar_select %p61, %s62, %s63
      %p67 = pneg %p61
      %p68 = scmp.eq.s32.totalorder %s12, 3
      %p69 = por %p67, %p68
      %p70 = scmp.ne.s32.totalorder %s62, %s65
      %p71 = scmp.eq.s32.totalorder %s12, 0
      %p72 = por %p70, %p71
      %p73 = scmp.ne.s32.totalorder %s62, %s65
      %p74 = scmp.eq.s32.totalorder %s17, 3
      %p75 = por %p73, %p74
      %p76 = scmp.ne.s32.totalorder %s65, %s66
      %p77 = scmp.eq.s32.totalorder %s17, 0
      %p78 = por %p76, %p77
      %p79 = scmp.ne.s32.totalorder %s65, %s66
      %p80 = scmp.eq.s32.totalorder %s18, 3
      %p81 = por %p79, %p80
      %p83 = scmp.ne.s32.totalorder %s66, %s82
      %p84 = scmp.eq.s32.totalorder %s18, 0
      %p85 = por %p83, %p84
      %s86 = ssub.s32 %s19, %s31
      %p87 = scmp.eq.s32.totalorder %s86, 0
      %s89 = sadd.s32 %s88, 1
      %s90 = scalar_select %p87, %s88, %s89
      %p93 = pneg %p87
      %p94 = scmp.eq.s32.totalorder %s12, 3
      %p95 = por %p93, %p94
      %p96 = scmp.ne.s32.totalorder %s88, %s91
      %p97 = scmp.eq.s32.totalorder %s12, 0
      %p98 = por %p96, %p97
      %p99 = scmp.ne.s32.totalorder %s88, %s91
      %p100 = scmp.eq.s32.totalorder %s17, 3
      %p101 = por %p99, %p100
      %p102 = scmp.ne.s32.totalorder %s91, %s92
      %p103 = scmp.eq.s32.totalorder %s17, 0
      %p104 = por %p102, %p103
      %p105 = scmp.ne.s32.totalorder %s91, %s92
      %p106 = scmp.eq.s32.totalorder %s18, 3
      %p107 = por %p105, %p106
      %p109 = scmp.ne.s32.totalorder %s92, %s108
      %p110 = scmp.eq.s32.totalorder %s18, 0
      %p111 = por %p109, %p110
      %s112 = ssub.s32 %s19, %s31
      %s113 = ssub.s32 %s20, %s27
      %s114 = sor.u32 %s112, %s113
      %p115 = scmp.eq.s32.totalorder %s114, 0
      %s117 = sadd.s32 %s116, 1
      %s118 = scalar_select %p115, %s116, %s117
      %p121 = pneg %p115
      %p122 = scmp.eq.s32.totalorder %s12, 3
      %p123 = por %p121, %p122
      %p124 = scmp.ne.s32.totalorder %s116, %s119
      %p125 = scmp.eq.s32.totalorder %s12, 0
      %p126 = por %p124, %p125
      %p127 = scmp.ne.s32.totalorder %s116, %s119
      %p128 = scmp.eq.s32.totalorder %s17, 3
      %p129 = por %p127, %p128
      %p130 = scmp.ne.s32.totalorder %s119, %s120
      %p131 = scmp.eq.s32.totalorder %s17, 0
      %p132 = por %p130, %p131
      %p133 = scmp.ne.s32.totalorder %s119, %s120
      %p134 = scmp.eq.s32.totalorder %s18, 3
      %p135 = por %p133, %p134
      %p137 = scmp.ne.s32.totalorder %s120, %s136
      %p138 = scmp.eq.s32.totalorder %s18, 0
      %p139 = por %p137, %p138
      %p140 = scmp.le.s32.totalorder 1, %s12
      %p141 = scmp.lt.s32.totalorder %s12, 5
      %p142 = pnand %p140, %p141
      %p143 = pneg %p142
      // Predicated region
      $region9: #{tpu_custom_call.1} parent=5 // pred_check
        _
      $region10: #{tpu_custom_call.1} parent=5 // pred_check_branch
        %145 = sbr.rel (%p142) target = $region12
      $region11: #{tpu_custom_call.1} parent=5 // pred_region
        %s146 = ssub.s32 %s12, 1
      $region12: #{tpu_custom_call.1} parent=5 // pred_fallthru
        _
      %p147 = scmp.lt.s32.totalorder %s12, 4
      // Predicated region
      $region13: #{tpu_custom_call.1} parent=5 // pred_check
        %p148 = pneg %p147
      $region14: #{tpu_custom_call.1} parent=5 // pred_check_branch
        %150 = sbr.rel (%p148) target = $region16
      $region15: #{tpu_custom_call.1} parent=5 // pred_region
        // Predicated region
        $region17: #{tpu_custom_call.1} parent=15 // pred_check
          %p151 = pneg %p46
        $region18: #{tpu_custom_call.1} parent=15 // pred_check_branch
          %153 = sbr.rel (%p151) target = $region20
        $region19: #{tpu_custom_call.1} parent=15 // pred_region
          %p154 = scmp.lt.s32.totalorder %s19, 1
          %s155 = scalar_select %p154, %s19, 1
          %p156 = scmp.lt.s32.totalorder %s20, 1
          %s157 = scalar_select %p156, %s20, 1
          %s158 = smul.addr %s155, 2
          %s159 = sadd.s32 %s157, %s158
          %s160 = smul.addr %s159, 8
          %s161 = scalar_lea.vmem %s0, %s160
        $region20: #{tpu_custom_call.1} parent=15 // pred_fallthru
          _
        // Predicated region
        $region21: #{tpu_custom_call.1} parent=15 // pred_check
          %p162 = pneg %p72
        $region22: #{tpu_custom_call.1} parent=15 // pred_check_branch
          %164 = sbr.rel (%p162) target = $region24
        $region23: #{tpu_custom_call.1} parent=15 // pred_region
          %p165 = scmp.lt.s32.totalorder %s19, 1
          %s166 = scalar_select %p165, %s19, 1
          %s167 = smul.addr %s166, 4
          %s168 = scalar_lea.vmem %s1, %s167
        $region24: #{tpu_custom_call.1} parent=15 // pred_fallthru
          _
        // Predicated region
        $region25: #{tpu_custom_call.1} parent=15 // pred_check
          %p169 = pneg %p98
        $region26: #{tpu_custom_call.1} parent=15 // pred_check_branch
          %171 = sbr.rel (%p169) target = $region28
        $region27: #{tpu_custom_call.1} parent=15 // pred_region
          %p172 = scmp.lt.s32.totalorder %s19, 1
          %s173 = scalar_select %p172, %s19, 1
          %s174 = scalar_lea.vmem %s2, %s173
        $region28: #{tpu_custom_call.1} parent=15 // pred_fallthru
          _
      $region16: #{tpu_custom_call.1} parent=5 // pred_fallthru
        _
      %p175 = scmp.le.s32.totalorder 1, %s12
      %p176 = scmp.lt.s32.totalorder %s12, 5
      %p177 = pnand %p175, %p176
      %p178 = pneg %p177
      // Predicated region
      $region29: #{tpu_custom_call.1} parent=5 // pred_check
        _
      $region30: #{tpu_custom_call.1} parent=5 // pred_check_branch
        %180 = sbr.rel (%p177) target = $region32
      $region31: #{tpu_custom_call.1} parent=5 // pred_region
        %s181 = ssub.s32 %s12, 1
        %p182 = scmp.lt.s32.totalorder %s21, 1
        %s183 = scalar_select %p182, %s21, 1
        %p184 = scmp.lt.s32.totalorder %s22, 1
        %s185 = scalar_select %p184, %s22, 1
        %s186 = smul.addr %s183, 2
        %s187 = sadd.s32 %s185, %s186
        %s188 = smul.addr %s187, 8
        %s189 = scalar_lea.vmem %s0, %s188
        %p190 = pneg %p52
        %p191 = pneg %p49
        %p192 = scmp.lt.s32.totalorder %s21, 1
        %s193 = scalar_select %p192, %s21, 1
        %s194 = smul.addr %s193, 4
        %s195 = scalar_lea.vmem %s1, %s194
        %p196 = pneg %p78
        %p197 = pneg %p75
        %p198 = scmp.lt.s32.totalorder %s21, 1
        %s199 = scalar_select %p198, %s21, 1
        %s200 = scalar_lea.vmem %s2, %s199
        %p201 = pneg %p104
        %p202 = pneg %p101
        %p203 = pneg %p132
        %p204 = pneg %p129
        %s205 = sand.u32 %s119, 1
        %s206 = scalar_lea.sflag [#allocation3], %s205
        %s207 = sand.u32 %s119, 1
        %s208 = smul.addr %s207, 8
        %s209 = scalar_lea.vmem [#allocation2], %s208
        %p210 = scmp.lt.s32.totalorder %s21, 1
        %s211 = scalar_select %p210, %s21, 1
        %p212 = scmp.lt.s32.totalorder %s22, 1
        %s213 = scalar_select %p212, %s22, 1
        %s214 = smul.addr %s211, 2
        %s215 = sadd.s32 %s213, %s214
        %s216 = smul.addr %s215, 8
        %s217 = scalar_lea.vmem %s0, %s216
        %p218 = scmp.lt.s32.totalorder %s21, 1
        %s219 = scalar_select %p218, %s21, 1
        %s220 = smul.addr %s219, 4
        %s221 = scalar_lea.vmem %s1, %s220
        %p222 = scmp.lt.s32.totalorder %s21, 1
        %s223 = scalar_select %p222, %s21, 1
        %s224 = scalar_lea.vmem %s2, %s223
        %v225 = vld [vmem:[%s217] sm:$0xff]
        %v226 = vld [vmem:[%s221] sm:$0x7]
        %vm227 = vcmask 23552
        %v229 = vsel %vm227, %v225, 0
        %vm231 = vcmask 1042432
        %v233 = vsel %vm231, %v226, 0
        %235 = vmatpush.msra.mxu0 0.0
        %236 = vmatpush.msra.mxu0 0.0
        %237 = vmatpush.msra.mxu0 0.0
        %238 = vmatpush.msra.mxu0 0.0
        %239 = vmatpush.msra.mxu0 0.0
        %240 = vmatpush.msra.mxu0 0.0
        %241 = vmatpush.msra.mxu0 0.0
        %242 = vmatpush.msra.mxu0 0.0
        %243 = vmatpush.msra.mxu0 0.0
        %244 = vmatpush.msra.mxu0 0.0
        %245 = vmatpush.msra.mxu0 0.0
        %246 = vmatpush.msra.mxu0 0.0
        %247 = vmatpush.msra.mxu0 0.0
        %248 = vmatpush.msra.mxu0 0.0
        %249 = vmatpush.msra.mxu0 0.0
        %250 = vmatpush.msra.mxu0 %v233
        %251 = vmatmul.f32.gmra.mxu0 %v229
        %v252 = vpop.f32.mrf.mxu0
        %v253 = vadd.f32 0.0, %v252
        %254 = vdwg.mxu0
        %v255 = vld [vmem:[%s224] sm:$0x1]
        %v256 = vmul.f32 %v253, 2.0
        %v258 = vperm.slane %v255, 0
        %v260 = vsub.f32 %v258, %v256
        %vm261 = vcmask 130048
        %262 = vst.msk [vmem:[%s209] sm:$0xff] %vm261, %v260
        %s263 = sand.u32 %s119, 1
        %s264 = scalar_lea.sflag [#allocation3], %s263
        %s265 = sand.u32 %s119, 1
        %s266 = smul.addr %s265, 8
        %s267 = scalar_lea.vmem [#allocation2], %s266
        // Predicated region
        $region33: #{tpu_custom_call.1} parent=31 // pred_check
          %p268 = pneg %p129
        $region34: #{tpu_custom_call.1} parent=31 // pred_check_branch
          %270 = sbr.rel (%p268) target = $region36
        $region35: #{tpu_custom_call.1} parent=31 // pred_region
          %272 = vsyncadd %s264, 0
          %s273 = smul.addr %s21, 2
          %s274 = sadd.s32 %s22, %s273
          %s275 = smul.addr %s274, 8
          %s276 = scalar_lea.hbm %s3, %s275
          %s278 = sshll.u32 %s267, 4
          %s279 = int_to_ptr.vmem [resolvable:$true] %s278
          %s280 = sshll.u32 %s276, 4
          %s281 = int_to_ptr.hbm [resolvable:$true] %s280
          %283 = dma.vmem_to_hbm [thread:$0]  %s279, 128, %s281, %s264
        $region36: #{tpu_custom_call.1} parent=31 // pred_fallthru
          _
      $region32: #{tpu_custom_call.1} parent=5 // pred_fallthru
        _
      %p284 = scmp.le.s32.totalorder 2, %s12
      // Predicated region
      $region37: #{tpu_custom_call.1} parent=5 // pred_check
        %p285 = pneg %p284
      $region38: #{tpu_custom_call.1} parent=5 // pred_check_branch
        %287 = sbr.rel (%p285) target = $region40
      $region39: #{tpu_custom_call.1} parent=5 // pred_region
        %s288 = ssub.s32 %s12, 2
        // Predicated region
        $region41: #{tpu_custom_call.1} parent=39 // pred_check
          %p289 = pneg %p135
        $region42: #{tpu_custom_call.1} parent=39 // pred_check_branch
          %291 = sbr.rel (%p289) target = $region44
        $region43: #{tpu_custom_call.1} parent=39 // pred_region
          %s292 = sand.u32 %s120, 1
          %s293 = scalar_lea.sflag [#allocation3], %s292
          %s294 = sand.u32 %s120, 1
          %s295 = smul.addr %s294, 8
          %s296 = scalar_lea.vmem [#allocation2], %s295
          %298 = dma.done %s293, 128
        $region44: #{tpu_custom_call.1} parent=39 // pred_fallthru
          _
      $region40: #{tpu_custom_call.1} parent=5 // pred_fallthru
        _
    $region6: #{tpu_custom_call.1} parent=1 // loop_footer
      %s16 = sadd.s32 1, %s12
    $region7: #{tpu_custom_call.1} parent=1 // loop_footer_branch
      %11 = sbr.rel target = $region3
    $region8: #{tpu_custom_call.1} parent=1 // loop_exit
      _
    %299 = vsyncpa [#allocation3], 1
    %s300 = scalar_lea.sflag [#allocation3], 1
    %301 = vsyncpa %s300, 1

</llo_original>
